<compile_context>
chip_gen: v5e
topology: v5e:2x2
jax: 0.10.0
libtpu: 0.0.40
codegen_flags: <defaults>
</compile_context>

<pallas_src>
import functools

import jax
import jax.numpy as jnp
from jax import lax
from jax.experimental import pallas as pl
from jax.experimental.pallas import tpu as pltpu


def _round_up(n, m):
    return ((n + m - 1) // m) * m


def _pick_block_b(B, cap=8):
    divisors = [c for c in range(min(B, cap), 0, -1) if B % c == 0]
    # Prefer >=2 batch-grid entries so the "parallel" axis can shard across
    # both v7x TensorCores.
    for c in divisors:
        if B // c >= 2:
            return c
    return divisors[0] if divisors else 1


def _vmem_capacity_bytes():
    try:
        info = pltpu.get_tpu_info()
        cap = getattr(info, "vmem_capacity_bytes", None)
        if cap:
            return int(cap)
    except Exception:
        pass
    return 64 * 1024 * 1024   # conservative fallback (v7x per-core size)


def _time_chunk_cap(block_b, D, Dp, Hp, x_bytes, y_bytes, vmem_bytes):
    """Largest time chunk whose per-step VMEM footprint fits comfortably."""
    budget = int(vmem_bytes * 0.45)
    # grid-invariant operands (assume double-buffered, f32 upper bound)
    fixed = 2 * (D * 2 * Hp + Hp * Dp + 2 * Hp + Hp + Dp) * 4
    # per-timestep bytes: x/y chunks (double-buffered) + live f32 intermediates
    # (z, a, bb, rolled temps, h_all) ~ 8 * Hp * 4 per (batch, t).
    per_t = block_b * (2 * D * x_bytes + 2 * Dp * y_bytes + 8 * Hp * 4)
    cap = max(8, ((budget - fixed) // max(per_t, 1)) // 8 * 8)
    return int(min(cap, 512))


def qgru_kernel(x_ref, h0_ref, wg_ref, bg_ref, lin_ref, wo_ref, bo_ref,
                y_ref, hlast_ref, h_carry, *, l_total, mask_tail):
    # x_ref:   (Bblk, Tc, D)        current batch-block / time-chunk of x
    # h0_ref:  (Bblk, 1, Hp) f32    initial hidden state (lane padded)
    # wg_ref:  (D, 2*Hp)            fused [Wf^T | Wi^T] (compute dtype)
    # bg_ref:  (1, 2*Hp) f32        fused [bf | bi]
    # lin_ref: (1, Hp)  f32         linspace(0,1,H) padded with zeros
    # wo_ref:  (Hp, Dp)             Wo^T padded with zero rows/cols
    # bo_ref:  (1, Dp)  f32
    # y_ref:   (Bblk, Tc, Dp)       lane-dense output chunk
    # hlast_ref:(Bblk, 1, Hp) f32   final hidden state (padded)
    # h_carry: (Bblk, 1, Hp) f32    hidden state carried across time chunks
    t_idx = pl.program_id(1)

    @pl.when(t_idx == 0)
    def _():
        # New batch block: load the initial hidden state.
        h_carry[...] = h0_ref[...]

    Bblk, Tc, D = x_ref.shape
    Hp = lin_ref.shape[1]
    Dp = wo_ref.shape[1]

    # ---- fused gate projection: ONE MXU matmul for both gates -------------
    x2 = x_ref[...].reshape(Bblk * Tc, D).astype(wg_ref.dtype)
    z = jnp.dot(x2, wg_ref[...], preferred_element_type=jnp.float32) + bg_ref[...]

    remember = jax.nn.sigmoid(z[:, :Hp]) * lin_ref[...]            # (M, Hp)
    a = (1.0 - remember).reshape(Bblk, Tc, Hp)                     # forget_t
    bb = (jnp.tanh(z[:, Hp:]) * remember).reshape(Bblk, Tc, Hp)    # remember_t * input_t

    # Local time index per element (hoisted; reused by every scan step).
    idx = lax.broadcasted_iota(jnp.int32, (Bblk, Tc, Hp), 1)

    if mask_tail:
        # Padded tail timesteps (global t >= L): identity element of the
        # affine monoid -> h stays at h_{L-1}, y garbage is cropped outside.
        valid = (t_idx * Tc + idx) < l_total
        a = jnp.where(valid, a, 1.0)
        bb = jnp.where(valid, bb, 0.0)

    # ---- vectorized inclusive scan over time of  h <- a*h + b  ------------
    # Hillis-Steele on the affine monoid (A, B): after the loop,
    #   A_t = prod_{s<=t} a_s ,  B_t = h_t with zero initial state.
    # Shifts go through the XLU (pltpu.roll along the sublane/time axis); the
    # wrapped-around prefix is replaced by the identity with a VPU select.
    d = 1
    while d < Tc:
        a_sh = jnp.where(idx < d, 1.0, pltpu.roll(a, shift=d, axis=1))
        b_sh = jnp.where(idx < d, 0.0, pltpu.roll(bb, shift=d, axis=1))
        bb = a * b_sh + bb          # B_t <- A_t * B_{t-d} + B_t
        a = a * a_sh                # A_t <- A_t * A_{t-d}
        d *= 2

    # Apply the chunk carry:  h_t = A_t * h_in + B_t   for every t at once.
    h_all = a * h_carry[...] + bb                       # (Bblk, Tc, Hp) f32
    h_carry[...] = h_all[:, Tc - 1:Tc, :]

    @pl.when(t_idx == pl.num_programs(1) - 1)
    def _():
        hlast_ref[...] = h_carry[...].astype(hlast_ref.dtype)

    # ---- output projection on the MXU (lane-dense Dp columns) -------------
    h2 = h_all.reshape(Bblk * Tc, Hp).astype(wo_ref.dtype)
    y = jnp.dot(h2, wo_ref[...], preferred_element_type=jnp.float32) + bo_ref[...]
    y_ref[...] = y.reshape(Bblk, Tc, Dp).astype(y_ref.dtype)


def qgru_forward(x, hidden, wf, bf, wi, bi, wo, bo, *,
                 compute_dtype=jnp.bfloat16, block_b=None, time_chunk=None):
    """x: (B, L, D), hidden: (B, H). Returns (y: (B, L, D), h_last: (B, H)).

    compute_dtype: dtype of the MXU matmul operands (accumulation and the
    recurrence always run in f32). bf16 is the fast path on v6e/v7x.
    """
    B, L, D = x.shape
    H = wf.shape[0]
    out_dtype = x.dtype
    f32 = jnp.float32

    Hp = _round_up(H, 128)                 # lane-dense recurrence tiles
    Dp = _round_up(D, 128)                 # lane-dense output slab

    if block_b is None:
        block_b = _pick_block_b(B)
    assert B % block_b == 0

    vmem_cap = _vmem_capacity_bytes()
    if time_chunk is None:
        cap = _time_chunk_cap(block_b, D, Dp, Hp,
                              jnp.dtype(x.dtype).itemsize,
                              jnp.dtype(out_dtype).itemsize, vmem_cap)
        time_chunk = min(_round_up(L, 8), cap)
    time_chunk = max(8, _round_up(int(time_chunk), 8))

    Lp = _round_up(L, time_chunk)          # padded sequence length
    x_in = x if Lp == L else jnp.pad(x, ((0, 0), (0, Lp - L), (0, 0)))

    # Fused, padded, pre-transposed gate weights/biases. Padded H lanes are
    # inert: zero weights/bias -> sigmoid(0)*lin_pad(=0) = 0 -> forget = 1,
    # remember*input = 0, and the padded Wo rows/cols are zero.
    wg = jnp.zeros((D, 2 * Hp), f32)
    wg = wg.at[:, :H].set(wf.T.astype(f32)).at[:, Hp:Hp + H].set(wi.T.astype(f32))
    wg = wg.astype(compute_dtype)
    bg = jnp.zeros((1, 2 * Hp), f32)
    bg = bg.at[0, :H].set(bf.astype(f32)).at[0, Hp:Hp + H].set(bi.astype(f32))
    lin = jnp.zeros((1, Hp), f32).at[0, :H].set(jnp.linspace(0.0, 1.0, H, dtype=f32))
    wo_p = jnp.zeros((Hp, Dp), f32).at[:H, :D].set(wo.T.astype(f32)).astype(compute_dtype)
    bo_p = jnp.zeros((1, Dp), f32).at[0, :D].set(bo.astype(f32))
    h0 = jnp.zeros((B, 1, Hp), f32).at[:, 0, :H].set(hidden.astype(f32))

    grid = (B // block_b, Lp // time_chunk)
    kernel = functools.partial(qgru_kernel, l_total=L, mask_tail=(Lp != L))

    y_pad, h_last_p = pl.pallas_call(
        kernel,
        out_shape=(
            jax.ShapeDtypeStruct((B, Lp, Dp), out_dtype),
            jax.ShapeDtypeStruct((B, 1, Hp), jnp.float32),
        ),
        grid=grid,
        in_specs=[
            pl.BlockSpec((block_b, time_chunk, D), lambda b, t: (b, t, 0)),   # x
            pl.BlockSpec((block_b, 1, Hp), lambda b, t: (b, 0, 0)),           # hidden
            pl.BlockSpec((D, 2 * Hp), lambda b, t: (0, 0)),                   # fused gate W
            pl.BlockSpec((1, 2 * Hp), lambda b, t: (0, 0)),                   # fused gate b
            pl.BlockSpec((1, Hp), lambda b, t: (0, 0)),                       # linspace
            pl.BlockSpec((Hp, Dp), lambda b, t: (0, 0)),                      # Wo^T (padded)
            pl.BlockSpec((1, Dp), lambda b, t: (0, 0)),                       # bo (padded)
        ],
        out_specs=(
            pl.BlockSpec((block_b, time_chunk, Dp), lambda b, t: (b, t, 0)),  # y (lane-dense)
            pl.BlockSpec((block_b, 1, Hp), lambda b, t: (b, 0, 0)),           # h_last
        ),
        scratch_shapes=[
            pltpu.VMEM((block_b, 1, Hp), jnp.float32),              # h carry across chunks
        ],
        compiler_params=pltpu.CompilerParams(
            dimension_semantics=("parallel", "arbitrary"),
            vmem_limit_bytes=int(vmem_cap * 3 // 4),
        ),
    )(x_in, h0, wg, bg, lin, wo_p, bo_p)

    y = y_pad[:, :L, :D] if (Lp != L or Dp != D) else y_pad
    return y, h_last_p[:, 0, :H].astype(hidden.dtype)


def qgru_ref(x, hidden, wf, bf, wi, bi, wo, bo):
    """Pure-JAX reference matching the PyTorch module."""
    H = wf.shape[0]
    lin = jnp.linspace(0.0, 1.0, H)[None, None, :]
    remember = jax.nn.sigmoid(x @ wf.T + bf) * lin
    forget = 1.0 - remember
    gate_in = jnp.tanh(x @ wi.T + bi)
    b = gate_in * remember

    def step(h, ab):
        a_t, b_t = ab
        h_new = a_t * h + b_t
        return h_new, h_new

    _, hs = lax.scan(step, hidden,
                     (jnp.swapaxes(forget, 0, 1), jnp.swapaxes(b, 0, 1)))
    h = jnp.swapaxes(hs, 0, 1)                              # (B, L, H)
    y = h @ wo.T + bo
    return y, h[:, -1, :]


if __name__ == "__main__":
    B, L, D, H = 2, 16, 16, 32

    key = jax.random.PRNGKey(0)
    keys = jax.random.split(key, 8)
    x = jax.random.normal(keys[0], (B, L, D), jnp.float32)
    hidden = jax.random.normal(keys[1], (B, H), jnp.float32)
    # Deterministic "Linear" parameters (synthetic init, shapes from __init__).
    wf = jax.random.normal(keys[2], (H, D), jnp.float32) * 0.1   # fc_forget.weight
    bf = jax.random.normal(keys[3], (H,), jnp.float32) * 0.1     # fc_forget.bias
    wi = jax.random.normal(keys[4], (H, D), jnp.float32) * 0.1   # fc_input.weight
    bi = jax.random.normal(keys[5], (H,), jnp.float32) * 0.1     # fc_input.bias
    wo = jax.random.normal(keys[6], (D, H), jnp.float32) * 0.1   # fc_out.weight
    bo = jax.random.normal(keys[7], (D,), jnp.float32) * 0.1     # fc_out.bias

    y_ref, h_ref = qgru_ref(x, hidden, wf, bf, wi, bi, wo, bo)

    # Exact-precision path (f32 MXU operands): tight check against the
    # reference. block_b=1, time_chunk=8 -> a 2x2 grid exercising both the
    # parallel batch axis and the cross-chunk hidden-state carry.
    y32, h32 = qgru_forward(x, hidden, wf, bf, wi, bi, wo, bo,
                            compute_dtype=jnp.float32, block_b=1, time_chunk=8)
    jax.block_until_ready((y32, h32))
    assert y32.shape == (B, L, D) and h32.shape == (B, H)
    assert jnp.allclose(y32, y_ref, atol=1e-4, rtol=1e-4)
    assert jnp.allclose(h32, h_ref, atol=1e-4, rtol=1e-4)

    # Ragged sequence length (L=13 not a multiple of 8) -> exercises the
    # padded-time path with in-kernel tail masking.
    xs = x[:, :13, :]
    y_ref2, h_ref2 = qgru_ref(xs, hidden, wf, bf, wi, bi, wo, bo)
    y13, h13 = qgru_forward(xs, hidden, wf, bf, wi, bi, wo, bo,
                            compute_dtype=jnp.float32, block_b=1, time_chunk=8)
    jax.block_until_ready((y13, h13))
    assert y13.shape == (B, 13, D) and h13.shape == (B, H)
    assert jnp.allclose(y13, y_ref2, atol=1e-4, rtol=1e-4)
    assert jnp.allclose(h13, h_ref2, atol=1e-4, rtol=1e-4)

    # Fast path (bf16 MXU operands, f32 accumulation/recurrence, auto tiling):
    # loose sanity check against the f32 reference.
    ybf, hbf = qgru_forward(x, hidden, wf, bf, wi, bi, wo, bo,
                            compute_dtype=jnp.bfloat16)
    jax.block_until_ready((ybf, hbf))
    assert jnp.allclose(ybf, y_ref, atol=1e-1, rtol=1e-1)
    assert jnp.allclose(hbf, h_ref, atol=1e-1, rtol=1e-1)

    print("KERNEL_OK")
</pallas_src>

<mosaic_0001>
module attributes {stable_mosaic.version = 11 : i64} {
  func.func @qgru_kernel(%arg0: i32, %arg1: i32, %arg2: memref<1x8x16xf32, #tpu.memory_space<vmem>>, %arg3: memref<1x1x128xf32, #tpu.memory_space<vmem>>, %arg4: memref<16x256xf32, #tpu.memory_space<vmem>>, %arg5: memref<1x256xf32, #tpu.memory_space<vmem>>, %arg6: memref<1x128xf32, #tpu.memory_space<vmem>>, %arg7: memref<128x128xf32, #tpu.memory_space<vmem>>, %arg8: memref<1x128xf32, #tpu.memory_space<vmem>>, %arg9: memref<1x8x128xf32, #tpu.memory_space<vmem>>, %arg10: memref<1x1x128xf32, #tpu.memory_space<vmem>>, %arg11: memref<1x1x128xf32, #tpu.memory_space<vmem>>) attributes {dimension_semantics = [#tpu.dimension_semantics<parallel>, #tpu.dimension_semantics<arbitrary>], iteration_bounds = array<i64: 2, 2>, scalar_prefetch = 0 : i64, scratch_operands = 1 : i64, tpu.core_type = #tpu.core_type<tc>, window_params = [{transform_indices = @transform_0, window_bounds = array<i64: 1, 8, 16>}, {transform_indices = @transform_1, window_bounds = array<i64: 1, 1, 128>}, {pipeline_mode = #tpu.pipeline_mode<synchronous>, transform_indices = @transform_2, window_bounds = array<i64: 16, 256>}, {pipeline_mode = #tpu.pipeline_mode<synchronous>, transform_indices = @transform_3, window_bounds = array<i64: 1, 256>}, {pipeline_mode = #tpu.pipeline_mode<synchronous>, transform_indices = @transform_4, window_bounds = array<i64: 1, 128>}, {pipeline_mode = #tpu.pipeline_mode<synchronous>, transform_indices = @transform_5, window_bounds = array<i64: 128, 128>}, {pipeline_mode = #tpu.pipeline_mode<synchronous>, transform_indices = @transform_6, window_bounds = array<i64: 1, 128>}, {transform_indices = @transform_7, window_bounds = array<i64: 1, 8, 128>}, {transform_indices = @transform_8, window_bounds = array<i64: 1, 1, 128>}]} {
    %c0_i32 = arith.constant 0 : i32
    %0 = arith.cmpi eq, %arg1, %c0_i32 : i32
    %1 = arith.extui %0 : i1 to i32
    %c0_i32_0 = arith.constant 0 : i32
    %2 = arith.cmpi ne, %1, %c0_i32_0 : i32
    scf.if %2 {
      %c0_42 = arith.constant 0 : index
      %c0_43 = arith.constant 0 : index
      %c0_44 = arith.constant 0 : index
      %83 = vector.load %arg3[%c0_42, %c0_43, %c0_44] : memref<1x1x128xf32, #tpu.memory_space<vmem>>, vector<1x1x128xf32>
      %c0_45 = arith.constant 0 : index
      %c0_46 = arith.constant 0 : index
      %c0_47 = arith.constant 0 : index
      %84 = vector.load %arg11[%c0_45, %c0_46, %c0_47] : memref<1x1x128xf32, #tpu.memory_space<vmem>>, vector<1x1x128xf32>
      tpu.vector_store %arg11[%c0_45, %c0_46, %c0_47], %83 {strides = array<i32>} : memref<1x1x128xf32, #tpu.memory_space<vmem>>, vector<1x1x128xf32>,
    } else {
    }
    %c0 = arith.constant 0 : index
    %c0_1 = arith.constant 0 : index
    %c0_2 = arith.constant 0 : index
    %3 = vector.load %arg2[%c0, %c0_1, %c0_2] : memref<1x8x16xf32, #tpu.memory_space<vmem>>, vector<1x8x16xf32>
    %4 = vector.shape_cast %3 : vector<1x8x16xf32> to vector<8x16xf32>
    %c0_3 = arith.constant 0 : index
    %c0_4 = arith.constant 0 : index
    %5 = vector.load %arg4[%c0_3, %c0_4] : memref<16x256xf32, #tpu.memory_space<vmem>>, vector<16x256xf32>
    %cst = arith.constant dense<0.000000e+00> : vector<8x256xf32>
    %6 = tpu.matmul %4, %5, %cst {dimension_numbers = #tpu.dot_dimension_numbers<[1], [0], [0], [1], [0, 0, 1, 1], [], []>} : vector<8x16xf32>, vector<16x256xf32>, vector<8x256xf32> -> vector<8x256xf32>
    %c0_5 = arith.constant 0 : index
    %c0_6 = arith.constant 0 : index
    %7 = vector.load %arg5[%c0_5, %c0_6] : memref<1x256xf32, #tpu.memory_space<vmem>>, vector<1x256xf32>
    %8 = vector.broadcast %7 : vector<1x256xf32> to vector<8x256xf32>
    %9 = arith.addf %6, %8 : vector<8x256xf32>
    %10 = vector.extract_strided_slice %9 {offsets = [0, 0], sizes = [8, 128], strides = [1, 1]} : vector<8x256xf32> to vector<8x128xf32>
    %11 = arith.negf %10 : vector<8x128xf32>
    %12 = math.exp %11 : vector<8x128xf32>
    %cst_7 = arith.constant 1.000000e+00 : f32
    %13 = vector.broadcast %cst_7 : f32 to vector<8x128xf32>
    %14 = arith.addf %13, %12 : vector<8x128xf32>
    %15 = arith.divf %13, %14 : vector<8x128xf32>
    %c0_8 = arith.constant 0 : index
    %c0_9 = arith.constant 0 : index
    %16 = vector.load %arg6[%c0_8, %c0_9] : memref<1x128xf32, #tpu.memory_space<vmem>>, vector<1x128xf32>
    %17 = vector.broadcast %16 : vector<1x128xf32> to vector<8x128xf32>
    %18 = arith.mulf %15, %17 : vector<8x128xf32>
    %cst_10 = arith.constant 1.000000e+00 : f32
    %19 = vector.broadcast %cst_10 : f32 to vector<8x128xf32>
    %20 = arith.subf %19, %18 : vector<8x128xf32>
    %21 = vector.shape_cast %20 : vector<8x128xf32> to vector<1x8x128xf32>
    %22 = vector.extract_strided_slice %9 {offsets = [0, 128], sizes = [8, 128], strides = [1, 1]} : vector<8x256xf32> to vector<8x128xf32>
    %23 = math.tanh %22 : vector<8x128xf32>
    %24 = arith.mulf %23, %18 : vector<8x128xf32>
    %25 = vector.shape_cast %24 : vector<8x128xf32> to vector<1x8x128xf32>
    %26 = tpu.iota {dimensions = array<i32: 1>} : vector<1x8x128xi32>
    %c1_i32 = arith.constant 1 : i32
    %27 = vector.broadcast %c1_i32 : i32 to vector<1x8x128xi32>
    %28 = arith.cmpi slt, %26, %27 : vector<1x8x128xi32>
    %c1_i32_11 = arith.constant 1 : i32
    %29 = tpu.dynamic_rotate %21 by %c1_i32_11 dim 1 : vector<1x8x128xf32>, i32 -> vector<1x8x128xf32>
    %cst_12 = arith.constant 1.000000e+00 : f32
    %30 = vector.broadcast %cst_12 : f32 to vector<1x8x128xf32>
    %31 = arith.select %28, %30, %29 : vector<1x8x128xi1>, vector<1x8x128xf32>
    %c1_i32_13 = arith.constant 1 : i32
    %32 = vector.broadcast %c1_i32_13 : i32 to vector<1x8x128xi32>
    %33 = arith.cmpi slt, %26, %32 : vector<1x8x128xi32>
    %c1_i32_14 = arith.constant 1 : i32
    %34 = tpu.dynamic_rotate %25 by %c1_i32_14 dim 1 : vector<1x8x128xf32>, i32 -> vector<1x8x128xf32>
    %cst_15 = arith.constant 0.000000e+00 : f32
    %35 = vector.broadcast %cst_15 : f32 to vector<1x8x128xf32>
    %36 = arith.select %33, %35, %34 : vector<1x8x128xi1>, vector<1x8x128xf32>
    %37 = arith.mulf %21, %36 : vector<1x8x128xf32>
    %38 = arith.addf %37, %25 : vector<1x8x128xf32>
    %39 = arith.mulf %21, %31 : vector<1x8x128xf32>
    %c2_i32 = arith.constant 2 : i32
    %40 = vector.broadcast %c2_i32 : i32 to vector<1x8x128xi32>
    %41 = arith.cmpi slt, %26, %40 : vector<1x8x128xi32>
    %c2_i32_16 = arith.constant 2 : i32
    %42 = tpu.dynamic_rotate %39 by %c2_i32_16 dim 1 : vector<1x8x128xf32>, i32 -> vector<1x8x128xf32>
    %cst_17 = arith.constant 1.000000e+00 : f32
    %43 = vector.broadcast %cst_17 : f32 to vector<1x8x128xf32>
    %44 = arith.select %41, %43, %42 : vector<1x8x128xi1>, vector<1x8x128xf32>
    %c2_i32_18 = arith.constant 2 : i32
    %45 = vector.broadcast %c2_i32_18 : i32 to vector<1x8x128xi32>
    %46 = arith.cmpi slt, %26, %45 : vector<1x8x128xi32>
    %c2_i32_19 = arith.constant 2 : i32
    %47 = tpu.dynamic_rotate %38 by %c2_i32_19 dim 1 : vector<1x8x128xf32>, i32 -> vector<1x8x128xf32>
    %cst_20 = arith.constant 0.000000e+00 : f32
    %48 = vector.broadcast %cst_20 : f32 to vector<1x8x128xf32>
    %49 = arith.select %46, %48, %47 : vector<1x8x128xi1>, vector<1x8x128xf32>
    %50 = arith.mulf %39, %49 : vector<1x8x128xf32>
    %51 = arith.addf %50, %38 : vector<1x8x128xf32>
    %52 = arith.mulf %39, %44 : vector<1x8x128xf32>
    %c4_i32 = arith.constant 4 : i32
    %53 = vector.broadcast %c4_i32 : i32 to vector<1x8x128xi32>
    %54 = arith.cmpi slt, %26, %53 : vector<1x8x128xi32>
    %c4_i32_21 = arith.constant 4 : i32
    %55 = tpu.dynamic_rotate %52 by %c4_i32_21 dim 1 : vector<1x8x128xf32>, i32 -> vector<1x8x128xf32>
    %cst_22 = arith.constant 1.000000e+00 : f32
    %56 = vector.broadcast %cst_22 : f32 to vector<1x8x128xf32>
    %57 = arith.select %54, %56, %55 : vector<1x8x128xi1>, vector<1x8x128xf32>
    %c4_i32_23 = arith.constant 4 : i32
    %58 = vector.broadcast %c4_i32_23 : i32 to vector<1x8x128xi32>
    %59 = arith.cmpi slt, %26, %58 : vector<1x8x128xi32>
    %c4_i32_24 = arith.constant 4 : i32
    %60 = tpu.dynamic_rotate %51 by %c4_i32_24 dim 1 : vector<1x8x128xf32>, i32 -> vector<1x8x128xf32>
    %cst_25 = arith.constant 0.000000e+00 : f32
    %61 = vector.broadcast %cst_25 : f32 to vector<1x8x128xf32>
    %62 = arith.select %59, %61, %60 : vector<1x8x128xi1>, vector<1x8x128xf32>
    %63 = arith.mulf %52, %62 : vector<1x8x128xf32>
    %64 = arith.addf %63, %51 : vector<1x8x128xf32>
    %65 = arith.mulf %52, %57 : vector<1x8x128xf32>
    %c0_26 = arith.constant 0 : index
    %c0_27 = arith.constant 0 : index
    %c0_28 = arith.constant 0 : index
    %66 = vector.load %arg11[%c0_26, %c0_27, %c0_28] : memref<1x1x128xf32, #tpu.memory_space<vmem>>, vector<1x1x128xf32>
    %67 = vector.broadcast %66 : vector<1x1x128xf32> to vector<1x8x128xf32>
    %68 = arith.mulf %65, %67 : vector<1x8x128xf32>
    %69 = arith.addf %68, %64 : vector<1x8x128xf32>
    %70 = vector.extract_strided_slice %69 {offsets = [0, 7, 0], sizes = [1, 1, 128], strides = [1, 1, 1]} : vector<1x8x128xf32> to vector<1x1x128xf32>
    %c0_29 = arith.constant 0 : index
    %c0_30 = arith.constant 0 : index
    %c0_31 = arith.constant 0 : index
    %71 = vector.load %arg11[%c0_29, %c0_30, %c0_31] : memref<1x1x128xf32, #tpu.memory_space<vmem>>, vector<1x1x128xf32>
    tpu.vector_store %arg11[%c0_29, %c0_30, %c0_31], %70 {strides = array<i32>} : memref<1x1x128xf32, #tpu.memory_space<vmem>>, vector<1x1x128xf32>,
    %c1_i32_32 = arith.constant 1 : i32
    %72 = arith.cmpi eq, %arg1, %c1_i32_32 : i32
    %73 = arith.extui %72 : i1 to i32
    %c0_i32_33 = arith.constant 0 : i32
    %74 = arith.cmpi ne, %73, %c0_i32_33 : i32
    scf.if %74 {
      %c0_42 = arith.constant 0 : index
      %c0_43 = arith.constant 0 : index
      %c0_44 = arith.constant 0 : index
      %83 = vector.load %arg11[%c0_42, %c0_43, %c0_44] : memref<1x1x128xf32, #tpu.memory_space<vmem>>, vector<1x1x128xf32>
      %c0_45 = arith.constant 0 : index
      %c0_46 = arith.constant 0 : index
      %c0_47 = arith.constant 0 : index
      %84 = vector.load %arg10[%c0_45, %c0_46, %c0_47] : memref<1x1x128xf32, #tpu.memory_space<vmem>>, vector<1x1x128xf32>
      tpu.vector_store %arg10[%c0_45, %c0_46, %c0_47], %83 {strides = array<i32>} : memref<1x1x128xf32, #tpu.memory_space<vmem>>, vector<1x1x128xf32>,
    } else {
    }
    %75 = vector.shape_cast %69 : vector<1x8x128xf32> to vector<8x128xf32>
    %c0_34 = arith.constant 0 : index
    %c0_35 = arith.constant 0 : index
    %76 = vector.load %arg7[%c0_34, %c0_35] : memref<128x128xf32, #tpu.memory_space<vmem>>, vector<128x128xf32>
    %cst_36 = arith.constant dense<0.000000e+00> : vector<8x128xf32>
    %77 = tpu.matmul %75, %76, %cst_36 {dimension_numbers = #tpu.dot_dimension_numbers<[1], [0], [0], [1], [0, 0, 1, 1], [], []>} : vector<8x128xf32>, vector<128x128xf32>, vector<8x128xf32> -> vector<8x128xf32>
    %c0_37 = arith.constant 0 : index
    %c0_38 = arith.constant 0 : index
    %78 = vector.load %arg8[%c0_37, %c0_38] : memref<1x128xf32, #tpu.memory_space<vmem>>, vector<1x128xf32>
    %79 = vector.broadcast %78 : vector<1x128xf32> to vector<8x128xf32>
    %80 = arith.addf %77, %79 : vector<8x128xf32>
    %81 = vector.shape_cast %80 : vector<8x128xf32> to vector<1x8x128xf32>
    %c0_39 = arith.constant 0 : index
    %c0_40 = arith.constant 0 : index
    %c0_41 = arith.constant 0 : index
    %82 = vector.load %arg9[%c0_39, %c0_40, %c0_41] : memref<1x8x128xf32, #tpu.memory_space<vmem>>, vector<1x8x128xf32>
    tpu.vector_store %arg9[%c0_39, %c0_40, %c0_41], %81 {strides = array<i32>} : memref<1x8x128xf32, #tpu.memory_space<vmem>>, vector<1x8x128xf32>,
    return
  }
  func.func @transform_0(%arg0: i32, %arg1: i32) -> (i32, i32, i32) {
    %c0_i32 = arith.constant 0 : i32
    %c0_i32_0 = arith.constant 0 : i32
    return %arg0, %arg1, %c0_i32 : i32, i32, i32
  }
  func.func @transform_1(%arg0: i32, %arg1: i32) -> (i32, i32, i32) {
    %c0_i32 = arith.constant 0 : i32
    %c0_i32_0 = arith.constant 0 : i32
    %c0_i32_1 = arith.constant 0 : i32
    return %arg0, %c0_i32, %c0_i32_0 : i32, i32, i32
  }
  func.func @transform_2(%arg0: i32, %arg1: i32) -> (i32, i32) {
    %c0_i32 = arith.constant 0 : i32
    %c0_i32_0 = arith.constant 0 : i32
    %c0_i32_1 = arith.constant 0 : i32
    return %c0_i32, %c0_i32_0 : i32, i32
  }
  func.func @transform_3(%arg0: i32, %arg1: i32) -> (i32, i32) {
    %c0_i32 = arith.constant 0 : i32
    %c0_i32_0 = arith.constant 0 : i32
    %c0_i32_1 = arith.constant 0 : i32
    return %c0_i32, %c0_i32_0 : i32, i32
  }
  func.func @transform_4(%arg0: i32, %arg1: i32) -> (i32, i32) {
    %c0_i32 = arith.constant 0 : i32
    %c0_i32_0 = arith.constant 0 : i32
    %c0_i32_1 = arith.constant 0 : i32
    return %c0_i32, %c0_i32_0 : i32, i32
  }
  func.func @transform_5(%arg0: i32, %arg1: i32) -> (i32, i32) {
    %c0_i32 = arith.constant 0 : i32
    %c0_i32_0 = arith.constant 0 : i32
    %c0_i32_1 = arith.constant 0 : i32
    return %c0_i32, %c0_i32_0 : i32, i32
  }
  func.func @transform_6(%arg0: i32, %arg1: i32) -> (i32, i32) {
    %c0_i32 = arith.constant 0 : i32
    %c0_i32_0 = arith.constant 0 : i32
    %c0_i32_1 = arith.constant 0 : i32
    return %c0_i32, %c0_i32_0 : i32, i32
  }
  func.func @transform_7(%arg0: i32, %arg1: i32) -> (i32, i32, i32) {
    %c0_i32 = arith.constant 0 : i32
    %c0_i32_0 = arith.constant 0 : i32
    return %arg0, %arg1, %c0_i32 : i32, i32, i32
  }
  func.func @transform_8(%arg0: i32, %arg1: i32) -> (i32, i32, i32) {
    %c0_i32 = arith.constant 0 : i32
    %c0_i32_0 = arith.constant 0 : i32
    %c0_i32_1 = arith.constant 0 : i32
    return %arg0, %c0_i32, %c0_i32_0 : i32, i32, i32
  }
}

</mosaic_0001>

<llo_original>
// kernel: tpu_custom_call.1
$region0: #{tpu_custom_call.1}
  #allocation0 [shape = 'u32[]', space=smem, size = 0x4, offset = 0x4, fixed_abs, tag = 'smem constant byte address 0x4 - core index']
  #allocation1 [shape = 'u32[72,128]{1,0:T(1,128)}', space=vmem, size = 0x9000, scoped, tag = 'internal scratch']
  #allocation2 [shape = 'f32[1,1,128]{2,1,0:T(1,128)}', space=vmem, size = 0x200, scoped, tag = 'scratch operand']
  %s0 = inlined_call_operand.hbm [shape: f32[2,16,16], index: 0, kind: input, shape index: {}]
  %s1 = inlined_call_operand.hbm [shape: f32[2,1,128], index: 1, kind: input, shape index: {}]
  %s2 = inlined_call_operand.hbm [shape: f32[16,256], index: 2, kind: input, shape index: {}]
  %s3 = inlined_call_operand.vmem [shape: f32[1,256], index: 3, kind: input, shape index: {}]
  %s4 = inlined_call_operand.vmem [shape: f32[1,128], index: 4, kind: input, shape index: {}]
  %s5 = inlined_call_operand.hbm [shape: f32[128,128], index: 5, kind: input, shape index: {}]
  %s6 = inlined_call_operand.vmem [shape: f32[1,128], index: 6, kind: input, shape index: {}]
  %s7 = inlined_call_operand.hbm [shape: f32[2,16,128], index: 7, kind: output, shape index: {0}]
  %s8 = inlined_call_operand.hbm [shape: f32[2,1,128], index: 8, kind: output, shape index: {1}]
  %9 = xla_tuple %s7, %s8
  %s10 = sld [smem:[#allocation0]]
  $region93: #{tpu_custom_call.1} parent=0
    _
  %s12 = ssub.s32 1, %s10
  %s13 = scalar_select 0, %s12, %s10
  $region1: #{tpu_custom_call.1} parent=0
    #allocation3 [shape = 'u8[8192]{0}', space=vmem, size = 0x2000, scoped, tag = 'input window, operand 0']
    #allocation4 [shape = 's32[2]{0}', space=sflag, size = 0x8, scoped, tag = 'scoped memory for tpu_custom_call.1']
    #allocation5 [shape = 's32[2]{0}', space=sflag, size = 0x8, scoped, tag = 'scoped memory for tpu_custom_call.1']
    #allocation6 [shape = 'u8[1024]{0}', space=vmem, size = 0x400, scoped, tag = 'input window, operand 1']
    #allocation7 [shape = 's32[2]{0}', space=sflag, size = 0x8, scoped, tag = 'scoped memory for tpu_custom_call.1']
    #allocation8 [shape = 'u8[16384]{0}', space=vmem, size = 0x4000, scoped, tag = 'input window, operand 2, single buffered']
    #allocation9 [shape = 'u8[65536]{0}', space=vmem, size = 0x10000, scoped, tag = 'input window, operand 5, single buffered']
    #allocation10 [shape = 's32[1]{0}', space=sflag, size = 0x4, scoped, tag = 'scoped memory for tpu_custom_call.1']
    #allocation11 [shape = 'u8[8192]{0}', space=vmem, size = 0x2000, scoped, tag = 'output window, operand 0']
    #allocation12 [shape = 'u8[1024]{0}', space=vmem, size = 0x400, scoped, tag = 'output window, operand 1']
    #allocation13 [shape = 's32[2]{0}', space=sflag, size = 0x8, scoped, tag = 'scoped memory for tpu_custom_call.1']
    %14 = vsyncpa [#allocation4], 0
    %s15 = scalar_lea.sflag [#allocation4], 1
    %16 = vsyncpa %s15, 0
    %17 = vsyncpa [#allocation7], 0
    %s18 = scalar_lea.sflag [#allocation7], 1
    %19 = vsyncpa %s18, 0
    %20 = vsyncpa [#allocation10], 0
    %21 = vsyncpa [#allocation5], 0
    %s22 = scalar_lea.sflag [#allocation5], 1
    %23 = vsyncpa %s22, 0
    %24 = vsyncpa [#allocation13], 0
    %s25 = scalar_lea.sflag [#allocation13], 1
    %26 = vsyncpa %s25, 0
    loop: start=0, step=1, limit=6
    $region2: #{tpu_custom_call.1} parent=1 // loop_pre_header
      _
    $region3: #{tpu_custom_call.1} parent=1 // loop_header
      %s28 = sphi 0, %s32
      %p29 = scmp.ge.s32.totalorder %s28, 6
      %s35 = sphi 0, %s47
      %s36 = sphi 0, %s43
      %s37 = sphi 0, %s35
      %s38 = sphi 0, %s36
      %s39 = sphi 0, %s37
      %s40 = sphi 0, %s38
      %s52 = sphi 0, %s54
      %s55 = sphi 0, %s52
      %s56 = sphi 0, %s55
      %s72 = sphi 0, %s56
      %s78 = sphi 0, %s80
      %s81 = sphi 0, %s78
      %s82 = sphi 0, %s81
      %s98 = sphi 0, %s82
      %s102 = sphi 0, %s102
      %s104 = sphi 0, %s102
      %s105 = sphi 0, %s104
      %s119 = sphi 0, %s105
      %s123 = sphi 0, %s123
      %s125 = sphi 0, %s123
      %s126 = sphi 0, %s125
      %s140 = sphi 0, %s126
      %s144 = sphi 0, %s144
      %s146 = sphi 0, %s144
      %s147 = sphi 0, %s146
      %s161 = sphi 0, %s147
      %s165 = sphi 0, %s165
      %s167 = sphi 0, %s165
      %s168 = sphi 0, %s167
      %s182 = sphi 0, %s168
      %s186 = sphi 0, %s186
      %s188 = sphi 0, %s186
      %s189 = sphi 0, %s188
      %s203 = sphi 0, %s189
      %s211 = sphi 0, %s213
      %s214 = sphi 0, %s211
      %s215 = sphi 0, %s214
      %s231 = sphi 0, %s215
      %s237 = sphi 0, %s239
      %s240 = sphi 0, %s237
      %s241 = sphi 0, %s240
      %s257 = sphi 0, %s241
    $region4: #{tpu_custom_call.1} parent=1 // loop_header_branch
      %31 = sbr.rel (%p29) target = $region8
    $region5: #{tpu_custom_call.1} parent=1 // loop_body
      %s33 = ssub.s32 %s28, 1
      %s34 = ssub.s32 %s28, 2
      %s41 = sadd.s32 1, %s36
      %p42 = scmp.ge.s32.totalorder %s41, 2
      %s43 = scalar_select %p42, 0, %s41
      %s44 = sadd.s32 1, %s35
      %s45 = scalar_select %p42, %s44, %s35
      %p46 = scmp.ge.s32.totalorder %s45, 2
      %s47 = scalar_select %p46, 0, %s45
      %s48 = ssub.s32 %s35, %s47
      %s49 = ssub.s32 %s36, %s43
      %s50 = sor.u32 %s48, %s49
      %p51 = scmp.eq.s32.totalorder %s50, 0
      %s53 = sadd.s32 %s52, 1
      %s54 = scalar_select %p51, %s52, %s53
      %p57 = pneg %p51
      %p58 = scmp.eq.s32.totalorder %s28, 3
      %p59 = por %p57, %p58
      %p60 = scmp.ne.s32.totalorder %s52, %s55
      %p61 = scmp.eq.s32.totalorder %s28, 0
      %p62 = por %p60, %p61
      %p63 = scmp.ne.s32.totalorder %s52, %s55
      %p64 = scmp.eq.s32.totalorder %s33, 3
      %p65 = por %p63, %p64
      %p66 = scmp.ne.s32.totalorder %s55, %s56
      %p67 = scmp.eq.s32.totalorder %s33, 0
      %p68 = por %p66, %p67
      %p69 = scmp.ne.s32.totalorder %s55, %s56
      %p70 = scmp.eq.s32.totalorder %s34, 3
      %p71 = por %p69, %p70
      %p73 = scmp.ne.s32.totalorder %s56, %s72
      %p74 = scmp.eq.s32.totalorder %s34, 0
      %p75 = por %p73, %p74
      %s76 = ssub.s32 %s35, %s47
      %p77 = scmp.eq.s32.totalorder %s76, 0
      %s79 = sadd.s32 %s78, 1
      %s80 = scalar_select %p77, %s78, %s79
      %p83 = pneg %p77
      %p84 = scmp.eq.s32.totalorder %s28, 3
      %p85 = por %p83, %p84
      %p86 = scmp.ne.s32.totalorder %s78, %s81
      %p87 = scmp.eq.s32.totalorder %s28, 0
      %p88 = por %p86, %p87
      %p89 = scmp.ne.s32.totalorder %s78, %s81
      %p90 = scmp.eq.s32.totalorder %s33, 3
      %p91 = por %p89, %p90
      %p92 = scmp.ne.s32.totalorder %s81, %s82
      %p93 = scmp.eq.s32.totalorder %s33, 0
      %p94 = por %p92, %p93
      %p95 = scmp.ne.s32.totalorder %s81, %s82
      %p96 = scmp.eq.s32.totalorder %s34, 3
      %p97 = por %p95, %p96
      %p99 = scmp.ne.s32.totalorder %s82, %s98
      %p100 = scmp.eq.s32.totalorder %s34, 0
      %p101 = por %p99, %p100
      %s103 = sadd.s32 %s102, 1
      %p106 = scmp.eq.s32.totalorder %s28, 3
      %p107 = scmp.ne.s32.totalorder %s102, %s104
      %p108 = scmp.eq.s32.totalorder %s28, 0
      %p109 = por %p107, %p108
      %p110 = scmp.ne.s32.totalorder %s102, %s104
      %p111 = scmp.eq.s32.totalorder %s33, 3
      %p112 = por %p110, %p111
      %p113 = scmp.ne.s32.totalorder %s104, %s105
      %p114 = scmp.eq.s32.totalorder %s33, 0
      %p115 = por %p113, %p114
      %p116 = scmp.ne.s32.totalorder %s104, %s105
      %p117 = scmp.eq.s32.totalorder %s34, 3
      %p118 = por %p116, %p117
      %p120 = scmp.ne.s32.totalorder %s105, %s119
      %p121 = scmp.eq.s32.totalorder %s34, 0
      %p122 = por %p120, %p121
      %s124 = sadd.s32 %s123, 1
      %p127 = scmp.eq.s32.totalorder %s28, 3
      %p128 = scmp.ne.s32.totalorder %s123, %s125
      %p129 = scmp.eq.s32.totalorder %s28, 0
      %p130 = por %p128, %p129
      %p131 = scmp.ne.s32.totalorder %s123, %s125
      %p132 = scmp.eq.s32.totalorder %s33, 3
      %p133 = por %p131, %p132
      %p134 = scmp.ne.s32.totalorder %s125, %s126
      %p135 = scmp.eq.s32.totalorder %s33, 0
      %p136 = por %p134, %p135
      %p137 = scmp.ne.s32.totalorder %s125, %s126
      %p138 = scmp.eq.s32.totalorder %s34, 3
      %p139 = por %p137, %p138
      %p141 = scmp.ne.s32.totalorder %s126, %s140
      %p142 = scmp.eq.s32.totalorder %s34, 0
      %p143 = por %p141, %p142
      %s145 = sadd.s32 %s144, 1
      %p148 = scmp.eq.s32.totalorder %s28, 3
      %p149 = scmp.ne.s32.totalorder %s144, %s146
      %p150 = scmp.eq.s32.totalorder %s28, 0
      %p151 = por %p149, %p150
      %p152 = scmp.ne.s32.totalorder %s144, %s146
      %p153 = scmp.eq.s32.totalorder %s33, 3
      %p154 = por %p152, %p153
      %p155 = scmp.ne.s32.totalorder %s146, %s147
      %p156 = scmp.eq.s32.totalorder %s33, 0
      %p157 = por %p155, %p156
      %p158 = scmp.ne.s32.totalorder %s146, %s147
      %p159 = scmp.eq.s32.totalorder %s34, 3
      %p160 = por %p158, %p159
      %p162 = scmp.ne.s32.totalorder %s147, %s161
      %p163 = scmp.eq.s32.totalorder %s34, 0
      %p164 = por %p162, %p163
      %s166 = sadd.s32 %s165, 1
      %p169 = scmp.eq.s32.totalorder %s28, 3
      %p170 = scmp.ne.s32.totalorder %s165, %s167
      %p171 = scmp.eq.s32.totalorder %s28, 0
      %p172 = por %p170, %p171
      %p173 = scmp.ne.s32.totalorder %s165, %s167
      %p174 = scmp.eq.s32.totalorder %s33, 3
      %p175 = por %p173, %p174
      %p176 = scmp.ne.s32.totalorder %s167, %s168
      %p177 = scmp.eq.s32.totalorder %s33, 0
      %p178 = por %p176, %p177
      %p179 = scmp.ne.s32.totalorder %s167, %s168
      %p180 = scmp.eq.s32.totalorder %s34, 3
      %p181 = por %p179, %p180
      %p183 = scmp.ne.s32.totalorder %s168, %s182
      %p184 = scmp.eq.s32.totalorder %s34, 0
      %p185 = por %p183, %p184
      %s187 = sadd.s32 %s186, 1
      %p190 = scmp.eq.s32.totalorder %s28, 3
      %p191 = scmp.ne.s32.totalorder %s186, %s188
      %p192 = scmp.eq.s32.totalorder %s28, 0
      %p193 = por %p191, %p192
      %p194 = scmp.ne.s32.totalorder %s186, %s188
      %p195 = scmp.eq.s32.totalorder %s33, 3
      %p196 = por %p194, %p195
      %p197 = scmp.ne.s32.totalorder %s188, %s189
      %p198 = scmp.eq.s32.totalorder %s33, 0
      %p199 = por %p197, %p198
      %p200 = scmp.ne.s32.totalorder %s188, %s189
      %p201 = scmp.eq.s32.totalorder %s34, 3
      %p202 = por %p200, %p201
      %p204 = scmp.ne.s32.totalorder %s189, %s203
      %p205 = scmp.eq.s32.totalorder %s34, 0
      %p206 = por %p204, %p205
      %s207 = ssub.s32 %s35, %s47
      %s208 = ssub.s32 %s36, %s43
      %s209 = sor.u32 %s207, %s208
      %p210 = scmp.eq.s32.totalorder %s209, 0
      %s212 = sadd.s32 %s211, 1
      %s213 = scalar_select %p210, %s211, %s212
      %p216 = pneg %p210
      %p217 = scmp.eq.s32.totalorder %s28, 3
      %p218 = por %p216, %p217
      %p219 = scmp.ne.s32.totalorder %s211, %s214
      %p220 = scmp.eq.s32.totalorder %s28, 0
      %p221 = por %p219, %p220
      %p222 = scmp.ne.s32.totalorder %s211, %s214
      %p223 = scmp.eq.s32.totalorder %s33, 3
      %p224 = por %p222, %p223
      %p225 = scmp.ne.s32.totalorder %s214, %s215
      %p226 = scmp.eq.s32.totalorder %s33, 0
      %p227 = por %p225, %p226
      %p228 = scmp.ne.s32.totalorder %s214, %s215
      %p229 = scmp.eq.s32.totalorder %s34, 3
      %p230 = por %p228, %p229
      %p232 = scmp.ne.s32.totalorder %s215, %s231
      %p233 = scmp.eq.s32.totalorder %s34, 0
      %p234 = por %p232, %p233
      %s235 = ssub.s32 %s35, %s47
      %p236 = scmp.eq.s32.totalorder %s235, 0
      %s238 = sadd.s32 %s237, 1
      %s239 = scalar_select %p236, %s237, %s238
      %p242 = pneg %p236
      %p243 = scmp.eq.s32.totalorder %s28, 3
      %p244 = por %p242, %p243
      %p245 = scmp.ne.s32.totalorder %s237, %s240
      %p246 = scmp.eq.s32.totalorder %s28, 0
      %p247 = por %p245, %p246
      %p248 = scmp.ne.s32.totalorder %s237, %s240
      %p249 = scmp.eq.s32.totalorder %s33, 3
      %p250 = por %p248, %p249
      %p251 = scmp.ne.s32.totalorder %s240, %s241
      %p252 = scmp.eq.s32.totalorder %s33, 0
      %p253 = por %p251, %p252
      %p254 = scmp.ne.s32.totalorder %s240, %s241
      %p255 = scmp.eq.s32.totalorder %s34, 3
      %p256 = por %p254, %p255
      %p258 = scmp.ne.s32.totalorder %s241, %s257
      %p259 = scmp.eq.s32.totalorder %s34, 0
      %p260 = por %p258, %p259
      %p261 = scmp.le.s32.totalorder 1, %s28
      %p262 = scmp.lt.s32.totalorder %s28, 5
      %p263 = pnand %p261, %p262
      %p264 = pneg %p263
      // Predicated region
      $region9: #{tpu_custom_call.1} parent=5 // pred_check
        _
      $region10: #{tpu_custom_call.1} parent=5 // pred_check_branch
        %266 = sbr.rel (%p263) target = $region12
      $region11: #{tpu_custom_call.1} parent=5 // pred_region
        %s267 = ssub.s32 %s28, 1
        // Predicated region
        $region13: #{tpu_custom_call.1} parent=11 // pred_check
          %p268 = pneg %p115
        $region14: #{tpu_custom_call.1} parent=11 // pred_check_branch
          %270 = sbr.rel (%p268) target = $region16
        $region15: #{tpu_custom_call.1} parent=11 // pred_region
          %272 = vsyncadd [#allocation7], 0
          %s273 = sshll.u32 %s2, 4
          %s274 = int_to_ptr.hbm [resolvable:$true] %s273
          %s275 = sshll.u32 [#allocation8], 4
          %s276 = int_to_ptr.vmem [resolvable:$true] %s275
          %281 = dma.hbm_to_vmem [thread:$0]  %s274, 512, %s276, [#allocation7], 256, 256, 16
        $region16: #{tpu_custom_call.1} parent=11 // pred_fallthru
          _
        // Predicated region
        $region17: #{tpu_custom_call.1} parent=11 // pred_check
          %p282 = pneg %p136
        $region18: #{tpu_custom_call.1} parent=11 // pred_check_branch
          %284 = sbr.rel (%p282) target = $region20
        $region19: #{tpu_custom_call.1} parent=11 // pred_region
          _
        $region20: #{tpu_custom_call.1} parent=11 // pred_fallthru
          _
        // Predicated region
        $region21: #{tpu_custom_call.1} parent=11 // pred_check
          %p285 = pneg %p157
        $region22: #{tpu_custom_call.1} parent=11 // pred_check_branch
          %287 = sbr.rel (%p285) target = $region24
        $region23: #{tpu_custom_call.1} parent=11 // pred_region
          _
        $region24: #{tpu_custom_call.1} parent=11 // pred_fallthru
          _
        // Predicated region
        $region25: #{tpu_custom_call.1} parent=11 // pred_check
          %p288 = pneg %p178
        $region26: #{tpu_custom_call.1} parent=11 // pred_check_branch
          %290 = sbr.rel (%p288) target = $region28
        $region27: #{tpu_custom_call.1} parent=11 // pred_region
          %292 = vsyncadd [#allocation10], 0
          %s293 = sshll.u32 %s5, 4
          %s294 = int_to_ptr.hbm [resolvable:$true] %s293
          %s295 = sshll.u32 [#allocation9], 4
          %s296 = int_to_ptr.vmem [resolvable:$true] %s295
          %301 = dma.hbm_to_vmem [thread:$0]  %s294, 2048, %s296, [#allocation10], 128, 128, 8
        $region28: #{tpu_custom_call.1} parent=11 // pred_fallthru
          _
        // Predicated region
        $region29: #{tpu_custom_call.1} parent=11 // pred_check
          %p302 = pneg %p199
        $region30: #{tpu_custom_call.1} parent=11 // pred_check_branch
          %304 = sbr.rel (%p302) target = $region32
        $region31: #{tpu_custom_call.1} parent=11 // pred_region
          _
        $region32: #{tpu_custom_call.1} parent=11 // pred_fallthru
          _
      $region12: #{tpu_custom_call.1} parent=5 // pred_fallthru
        _
      %p305 = scmp.lt.s32.totalorder %s28, 4
      // Predicated region
      $region33: #{tpu_custom_call.1} parent=5 // pred_check
        %p306 = pneg %p305
      $region34: #{tpu_custom_call.1} parent=5 // pred_check_branch
        %308 = sbr.rel (%p306) target = $region36
      $region35: #{tpu_custom_call.1} parent=5 // pred_region
        // Predicated region
        $region37: #{tpu_custom_call.1} parent=35 // pred_check
          %p309 = pneg %p62
        $region38: #{tpu_custom_call.1} parent=35 // pred_check_branch
          %311 = sbr.rel (%p309) target = $region40
        $region39: #{tpu_custom_call.1} parent=35 // pred_region
          %s312 = sand.u32 %s52, 1
          %s313 = scalar_lea.sflag [#allocation4], %s312
          %s314 = sand.u32 %s52, 1
          %s315 = smul.addr %s314, 8
          %s316 = scalar_lea.vmem [#allocation3], %s315
          %318 = vsyncadd %s313, 0
          %s319 = smul.addr %s35, 2
          %s320 = sadd.s32 %s36, %s319
          %s321 = smul.addr %s320, 8
          %s322 = scalar_lea.hbm %s0, %s321
          %s324 = sshll.u32 %s322, 4
          %s325 = int_to_ptr.hbm [resolvable:$true] %s324
          %s326 = sshll.u32 %s316, 4
          %s327 = int_to_ptr.vmem [resolvable:$true] %s326
          %329 = dma.hbm_to_vmem [thread:$0]  %s325, 128, %s327, %s313
        $region40: #{tpu_custom_call.1} parent=35 // pred_fallthru
          _
        // Predicated region
        $region41: #{tpu_custom_call.1} parent=35 // pred_check
          %p330 = pneg %p88
        $region42: #{tpu_custom_call.1} parent=35 // pred_check_branch
          %332 = sbr.rel (%p330) target = $region44
        $region43: #{tpu_custom_call.1} parent=35 // pred_region
          %s333 = sand.u32 %s28, 1
          %s334 = scalar_lea.sflag [#allocation7], %s333
          %s335 = sand.u32 %s78, 1
          %s336 = scalar_lea.vmem [#allocation6], %s335
          %338 = vsyncadd %s334, 0
          %s339 = scalar_lea.hbm %s1, %s35
          %s341 = sshll.u32 %s339, 4
          %s342 = int_to_ptr.hbm [resolvable:$true] %s341
          %s343 = sshll.u32 %s336, 4
          %s344 = int_to_ptr.vmem [resolvable:$true] %s343
          %346 = dma.hbm_to_vmem [thread:$0]  %s342, 16, %s344, %s334
        $region44: #{tpu_custom_call.1} parent=35 // pred_fallthru
          _
      $region36: #{tpu_custom_call.1} parent=5 // pred_fallthru
        _
      %p347 = scmp.le.s32.totalorder 1, %s28
      %p348 = scmp.lt.s32.totalorder %s28, 5
      %p349 = pnand %p347, %p348
      %p350 = pneg %p349
      // Predicated region
      $region45: #{tpu_custom_call.1} parent=5 // pred_check
        _
      $region46: #{tpu_custom_call.1} parent=5 // pred_check_branch
        %352 = sbr.rel (%p349) target = $region48
      $region47: #{tpu_custom_call.1} parent=5 // pred_region
        %s353 = ssub.s32 %s28, 1
        %s354 = sand.u32 %s55, 1
        %s355 = scalar_lea.sflag [#allocation4], %s354
        %s356 = sand.u32 %s55, 1
        %s357 = smul.addr %s356, 8
        %s358 = scalar_lea.vmem [#allocation3], %s357
        // Predicated region
        $region49: #{tpu_custom_call.1} parent=47 // pred_check
          %p359 = pneg %p68
        $region50: #{tpu_custom_call.1} parent=47 // pred_check_branch
          %361 = sbr.rel (%p359) target = $region52
        $region51: #{tpu_custom_call.1} parent=47 // pred_region
          %363 = dma.done %s355, 128
        $region52: #{tpu_custom_call.1} parent=47 // pred_fallthru
          _
        %s364 = sand.u32 %s33, 1
        %s365 = scalar_lea.sflag [#allocation7], %s364
        %s366 = sand.u32 %s81, 1
        %s367 = scalar_lea.vmem [#allocation6], %s366
        // Predicated region
        $region53: #{tpu_custom_call.1} parent=47 // pred_check
          %p368 = pneg %p94
        $region54: #{tpu_custom_call.1} parent=47 // pred_check_branch
          %370 = sbr.rel (%p368) target = $region56
        $region55: #{tpu_custom_call.1} parent=47 // pred_region
          %372 = dma.done %s365, 16
        $region56: #{tpu_custom_call.1} parent=47 // pred_fallthru
          _
        // Predicated region
        $region57: #{tpu_custom_call.1} parent=47 // pred_check
          %p373 = pneg %p115
        $region58: #{tpu_custom_call.1} parent=47 // pred_check_branch
          %375 = sbr.rel (%p373) target = $region60
        $region59: #{tpu_custom_call.1} parent=47 // pred_region
          %377 = dma.done [#allocation7], 512
        $region60: #{tpu_custom_call.1} parent=47 // pred_fallthru
          _
        // Predicated region
        $region61: #{tpu_custom_call.1} parent=47 // pred_check
          %p378 = pneg %p178
        $region62: #{tpu_custom_call.1} parent=47 // pred_check_branch
          %380 = sbr.rel (%p378) target = $region64
        $region63: #{tpu_custom_call.1} parent=47 // pred_region
          %382 = dma.done [#allocation10], 2048
        $region64: #{tpu_custom_call.1} parent=47 // pred_fallthru
          _
        %s383 = sand.u32 %s55, 1
        %s384 = scalar_lea.sflag [#allocation4], %s383
        %s385 = sand.u32 %s55, 1
        %s386 = smul.addr %s385, 8
        %s387 = scalar_lea.vmem [#allocation3], %s386
        %p388 = pneg %p68
        %p389 = pneg %p65
        %s390 = sand.u32 %s33, 1
        %s391 = scalar_lea.sflag [#allocation7], %s390
        %s392 = sand.u32 %s81, 1
        %s393 = scalar_lea.vmem [#allocation6], %s392
        %p394 = pneg %p94
        %p395 = pneg %p91
        %p396 = pneg %p115
        %p397 = pneg %p112
        %p398 = pneg %p136
        %p399 = pneg %p133
        %p400 = pneg %p157
        %p401 = pneg %p154
        %p402 = pneg %p178
        %p403 = pneg %p175
        %p404 = pneg %p199
        %p405 = pneg %p196
        %p406 = pneg %p227
        %p407 = pneg %p224
        %s408 = sand.u32 %s214, 1
        %s409 = scalar_lea.sflag [#allocation5], %s408
        %s410 = sand.u32 %s214, 1
        %s411 = smul.addr %s410, 8
        %s412 = scalar_lea.vmem [#allocation11], %s411
        %p413 = pneg %p253
        %p414 = pneg %p250
        %s415 = sand.u32 %s240, 1
        %s416 = scalar_lea.sflag [#allocation13], %s415
        %s417 = sand.u32 %s240, 1
        %s418 = scalar_lea.vmem [#allocation12], %s417
        %p419 = scmp.eq.s32.totalorder %s38, 0
        // Predicated region
        $region65: #{tpu_custom_call.1} parent=47 // pred_check
          %p420 = pneg %p419
        $region66: #{tpu_custom_call.1} parent=47 // pred_check_branch
          %422 = sbr.rel (%p420) target = $region68
        $region67: #{tpu_custom_call.1} parent=47 // pred_region
          %v423 = vld [vmem:[%s367] sm:$0x1]
          %424 = vst [vmem:[#allocation2] sm:$0x1] %v423
        $region68: #{tpu_custom_call.1} parent=47 // pred_fallthru
          _
        %v425 = vld [vmem:[%s358] sm:$0xff]
        %v426 = vld [vmem:[#allocation8] sm:$0xff]
        %v427 = vld [vmem:[#allocation8 + $0x8] sm:$0xff]
        %v428 = vld [vmem:[#allocation8 + $0x10] sm:$0xff]
        %v429 = vld [vmem:[#allocation8 + $0x18] sm:$0xff]
        %v430 = vld [vmem:[%s3] sm:$0x3]
        %v432 = vperm.slane %v430, 0
        %v433 = vperm.slane %v430, 1
        %vm436 = vcmask 130048
        %v438 = vsel %vm436, %v425, 0
        %440 = vmatpush.msra.mxu0 0.0
        %441 = vmatpush.msra.mxu0 0.0
        %442 = vmatpush.msra.mxu0 0.0
        %443 = vmatpush.msra.mxu0 0.0
        %444 = vmatpush.msra.mxu0 0.0
        %445 = vmatpush.msra.mxu0 0.0
        %446 = vmatpush.msra.mxu0 0.0
        %447 = vmatpush.msra.mxu0 0.0
        %448 = vmatpush.msra.mxu0 0.0
        %449 = vmatpush.msra.mxu0 0.0
        %450 = vmatpush.msra.mxu0 0.0
        %451 = vmatpush.msra.mxu0 0.0
        %452 = vmatpush.msra.mxu0 0.0
        %453 = vmatpush.msra.mxu0 0.0
        %454 = vmatpush.msra.mxu0 %v428
        %455 = vmatpush.msra.mxu0 %v426
        %456 = vmatmul.f32.gmra.mxu0 %v438
        %v457 = vpop.f32.mrf.mxu0
        %v458 = vadd.f32 %v432, %v457
        %459 = vdwg.mxu0
        %460 = vmatpush.msra.mxu0 0.0
        %461 = vmatpush.msra.mxu0 0.0
        %462 = vmatpush.msra.mxu0 0.0
        %463 = vmatpush.msra.mxu0 0.0
        %464 = vmatpush.msra.mxu0 0.0
        %465 = vmatpush.msra.mxu0 0.0
        %466 = vmatpush.msra.mxu0 0.0
        %467 = vmatpush.msra.mxu0 0.0
        %468 = vmatpush.msra.mxu0 0.0
        %469 = vmatpush.msra.mxu0 0.0
        %470 = vmatpush.msra.mxu0 0.0
        %471 = vmatpush.msra.mxu0 0.0
        %472 = vmatpush.msra.mxu0 0.0
        %473 = vmatpush.msra.mxu0 0.0
        %474 = vmatpush.msra.mxu0 %v429
        %475 = vmatpush.msra.mxu0 %v427
        %476 = vmatmul.f32.gmra.mxu0 %v438
        %v477 = vpop.f32.mrf.mxu0
        %v478 = vadd.f32 %v433, %v477
        %479 = vdwg.mxu0
        %v480 = vxor.u32 %v458, 2147483648
        %v481 = vmul.f32 %v480, 1.442695
        %v482 = vpow.pop %v481
        %v483 = vadd.f32 %v482, 1.0
        %v484 = vrcp.pop %v483
        %v485 = vmul.f32 %v483, %v484
        %v486 = vsub.f32 1.0, %v485
        %v487 = vmul.f32 %v484, %v486
        %v488 = vadd.f32 %v484, %v487
        %vm489 = vweird.f32 %v483
        %vm490 = vweird.f32 %v484
        %vm491 = vmor %vm489, %vm490
        %v492 = vsel %vm491, %v484, %v488
        %v493 = vand.u32 2147483647, %v483
        %vm494 = vcmp.eq.f32.partialorder %v493, 8.507059e+37
        %v495 = vand.u32 %v483, 2147483648
        %v496 = vor.u32 1.1754944e-38, %v495
        %v497 = vsel %vm494, %v496, %v492
        %v498 = vmul.f32 1.0, %v497
        %v499 = vld [vmem:[%s4] sm:$0x1]
        %v501 = vperm.slane %v499, 0
        %v503 = vmul.f32 %v498, %v501
        %v504 = vsub.f32 1.0, %v503
        %v505 = vtanh.pop %v478
        %v506 = vmul.f32 %v505, %v503
        %v507 = vlaneseq
        %v508 = vshrl.u32 %v507, 7
        %vm509 = vcmp.lt.s32.totalorder %v508, 1
        %v510 = vrot.slane %v504, 7
        %v511 = vsel %vm509, 1.0, %v510
        %v512 = vrot.slane %v506, 7
        %v513 = vsel %vm509, 0.0, %v512
        %v514 = vmul.f32 %v504, %v513
        %v515 = vadd.f32 %v514, %v506
        %v516 = vmul.f32 %v504, %v511
        %vm517 = vcmp.lt.s32.totalorder %v508, 2
        %v518 = vrot.slane %v516, 6
        %v519 = vsel %vm517, 1.0, %v518
        %v520 = vrot.slane %v515, 6
        %v521 = vsel %vm517, 0.0, %v520
        %v522 = vmul.f32 %v516, %v521
        %v523 = vadd.f32 %v522, %v515
        %v524 = vmul.f32 %v516, %v519
        %vm525 = vcmp.lt.s32.totalorder %v508, 4
        %v526 = vrot.slane %v524, 4
        %v527 = vsel %vm525, 1.0, %v526
        %v528 = vrot.slane %v523, 4
        %v529 = vsel %vm525, 0.0, %v528
        %v530 = vmul.f32 %v524, %v529
        %v531 = vadd.f32 %v530, %v523
        %v532 = vmul.f32 %v524, %v527
        %v533 = vld [vmem:[#allocation2] sm:$0x1]
        %v535 = vperm.slane %v533, 0
        %v537 = vmul.f32 %v532, %v535
        %v538 = vadd.f32 %v537, %v531
        %539 = vst [vmem:[#allocation2 - $0x7] sm:$0x80] %v538
        %p540 = scmp.eq.s32.totalorder %s38, 1
        // Predicated region
        $region69: #{tpu_custom_call.1} parent=47 // pred_check
          %p541 = pneg %p540
        $region70: #{tpu_custom_call.1} parent=47 // pred_check_branch
          %543 = sbr.rel (%p541) target = $region72
        $region71: #{tpu_custom_call.1} parent=47 // pred_region
          %v544 = vld [vmem:[#allocation2] sm:$0x1]
          %545 = vst [vmem:[%s418] sm:$0x1] %v544
        $region72: #{tpu_custom_call.1} parent=47 // pred_fallthru
          _
        %v546 = vld [vmem:[#allocation9] sm:$0xff]
        %v547 = vld [vmem:[#allocation9 + $0x8] sm:$0xff]
        %v548 = vld [vmem:[#allocation9 + $0x10] sm:$0xff]
        %v549 = vld [vmem:[#allocation9 + $0x18] sm:$0xff]
        %v550 = vld [vmem:[#allocation9 + $0x20] sm:$0xff]
        %v551 = vld [vmem:[#allocation9 + $0x28] sm:$0xff]
        %v552 = vld [vmem:[#allocation9 + $0x30] sm:$0xff]
        %v553 = vld [vmem:[#allocation9 + $0x38] sm:$0xff]
        %v554 = vld [vmem:[#allocation9 + $0x40] sm:$0xff]
        %v555 = vld [vmem:[#allocation9 + $0x48] sm:$0xff]
        %v556 = vld [vmem:[#allocation9 + $0x50] sm:$0xff]
        %v557 = vld [vmem:[#allocation9 + $0x58] sm:$0xff]
        %v558 = vld [vmem:[#allocation9 + $0x60] sm:$0xff]
        %v559 = vld [vmem:[#allocation9 + $0x68] sm:$0xff]
        %v560 = vld [vmem:[#allocation9 + $0x70] sm:$0xff]
        %v561 = vld [vmem:[#allocation9 + $0x78] sm:$0xff]
        %v562 = vld [vmem:[%s6] sm:$0x1]
        %v564 = vperm.slane %v562, 0
        %566 = vmatpush.msra.mxu0 %v561
        %567 = vmatpush.msra.mxu0 %v560
        %568 = vmatpush.msra.mxu0 %v559
        %569 = vmatpush.msra.mxu0 %v558
        %570 = vmatpush.msra.mxu0 %v557
        %571 = vmatpush.msra.mxu0 %v556
        %572 = vmatpush.msra.mxu0 %v555
        %573 = vmatpush.msra.mxu0 %v554
        %574 = vmatpush.msra.mxu0 %v553
        %575 = vmatpush.msra.mxu0 %v552
        %576 = vmatpush.msra.mxu0 %v551
        %577 = vmatpush.msra.mxu0 %v550
        %578 = vmatpush.msra.mxu0 %v549
        %579 = vmatpush.msra.mxu0 %v548
        %580 = vmatpush.msra.mxu0 %v547
        %581 = vmatpush.msra.mxu0 %v546
        %582 = vmatmul.f32.gmra.mxu0 %v538
        %v583 = vpop.f32.mrf.mxu0
        %v584 = vadd.f32 %v564, %v583
        %585 = vdwg.mxu0
        %586 = vst [vmem:[%s412] sm:$0xff] %v584
        %s587 = sand.u32 %s214, 1
        %s588 = scalar_lea.sflag [#allocation5], %s587
        %s589 = sand.u32 %s214, 1
        %s590 = smul.addr %s589, 8
        %s591 = scalar_lea.vmem [#allocation11], %s590
        %s592 = sand.u32 %s240, 1
        %s593 = scalar_lea.sflag [#allocation13], %s592
        %s594 = sand.u32 %s240, 1
        %s595 = scalar_lea.vmem [#allocation12], %s594
        // Predicated region
        $region73: #{tpu_custom_call.1} parent=47 // pred_check
          %p596 = pneg %p224
        $region74: #{tpu_custom_call.1} parent=47 // pred_check_branch
          %598 = sbr.rel (%p596) target = $region76
        $region75: #{tpu_custom_call.1} parent=47 // pred_region
          %600 = vsyncadd %s588, 0
          %s601 = smul.addr %s37, 2
          %s602 = sadd.s32 %s38, %s601
          %s603 = smul.addr %s602, 8
          %s604 = scalar_lea.hbm %s7, %s603
          %s606 = sshll.u32 %s591, 4
          %s607 = int_to_ptr.vmem [resolvable:$true] %s606
          %s608 = sshll.u32 %s604, 4
          %s609 = int_to_ptr.hbm [resolvable:$true] %s608
          %611 = dma.vmem_to_hbm [thread:$0]  %s607, 128, %s609, %s588
        $region76: #{tpu_custom_call.1} parent=47 // pred_fallthru
          _
        // Predicated region
        $region77: #{tpu_custom_call.1} parent=47 // pred_check
          %p612 = pneg %p250
        $region78: #{tpu_custom_call.1} parent=47 // pred_check_branch
          %614 = sbr.rel (%p612) target = $region80
        $region79: #{tpu_custom_call.1} parent=47 // pred_region
          %616 = vsyncadd %s593, 0
          %s617 = scalar_lea.hbm %s8, %s37
          %s619 = sshll.u32 %s595, 4
          %s620 = int_to_ptr.vmem [resolvable:$true] %s619
          %s621 = sshll.u32 %s617, 4
          %s622 = int_to_ptr.hbm [resolvable:$true] %s621
          %624 = dma.vmem_to_hbm [thread:$0]  %s620, 16, %s622, %s593
        $region80: #{tpu_custom_call.1} parent=47 // pred_fallthru
          _
      $region48: #{tpu_custom_call.1} parent=5 // pred_fallthru
        _
      %p625 = scmp.le.s32.totalorder 2, %s28
      // Predicated region
      $region81: #{tpu_custom_call.1} parent=5 // pred_check
        %p626 = pneg %p625
      $region82: #{tpu_custom_call.1} parent=5 // pred_check_branch
        %628 = sbr.rel (%p626) target = $region84
      $region83: #{tpu_custom_call.1} parent=5 // pred_region
        %s629 = ssub.s32 %s28, 2
        // Predicated region
        $region85: #{tpu_custom_call.1} parent=83 // pred_check
          %p630 = pneg %p230
        $region86: #{tpu_custom_call.1} parent=83 // pred_check_branch
          %632 = sbr.rel (%p630) target = $region88
        $region87: #{tpu_custom_call.1} parent=83 // pred_region
          %s633 = sand.u32 %s215, 1
          %s634 = scalar_lea.sflag [#allocation5], %s633
          %s635 = sand.u32 %s215, 1
          %s636 = smul.addr %s635, 8
          %s637 = scalar_lea.vmem [#allocation11], %s636
          %639 = dma.done %s634, 128
        $region88: #{tpu_custom_call.1} parent=83 // pred_fallthru
          _
        // Predicated region
        $region89: #{tpu_custom_call.1} parent=83 // pred_check
          %p640 = pneg %p256
        $region90: #{tpu_custom_call.1} parent=83 // pred_check_branch
          %642 = sbr.rel (%p640) target = $region92
        $region91: #{tpu_custom_call.1} parent=83 // pred_region
          %s643 = sand.u32 %s241, 1
          %s644 = scalar_lea.sflag [#allocation13], %s643
          %s645 = sand.u32 %s241, 1
          %s646 = scalar_lea.vmem [#allocation12], %s645
          %648 = dma.done %s644, 16
        $region92: #{tpu_custom_call.1} parent=83 // pred_fallthru
          _
      $region84: #{tpu_custom_call.1} parent=5 // pred_fallthru
        _
    $region6: #{tpu_custom_call.1} parent=1 // loop_footer
      %s32 = sadd.s32 1, %s28
    $region7: #{tpu_custom_call.1} parent=1 // loop_footer_branch
      %27 = sbr.rel target = $region3
    $region8: #{tpu_custom_call.1} parent=1 // loop_exit
      _
    %649 = vsyncpa [#allocation4], 1
    %s650 = scalar_lea.sflag [#allocation4], 1
    %651 = vsyncpa %s650, 1
    %652 = vsyncpa [#allocation7], 1
    %s653 = scalar_lea.sflag [#allocation7], 1
    %654 = vsyncpa %s653, 1
    %655 = vsyncpa [#allocation10], 1
    %656 = vsyncpa [#allocation5], 1
    %s657 = scalar_lea.sflag [#allocation5], 1
    %658 = vsyncpa %s657, 1
    %659 = vsyncpa [#allocation13], 1
    %s660 = scalar_lea.sflag [#allocation13], 1
    %661 = vsyncpa %s660, 1

</llo_original>
